<compile_context>
chip_gen: v7x
topology: tpu7x:2x2x1
jax: 0.10.0
libtpu: 0.0.40
codegen_flags: <defaults>
</compile_context>

<pallas_src>
import math

import jax
import jax.numpy as jnp
from jax.experimental import pallas as pl
from jax.experimental.pallas import tpu as pltpu


def _softshrink(x, lbd):
    # relu(x - lbd) - relu(-(x + lbd))  (matches the PyTorch helper)
    x_p = jnp.maximum(x - lbd, 0.0)
    x_n = jnp.maximum(-(x + lbd), 0.0)
    return x_p - x_n


def _iabn_kernel(x_ref, mu_b_ref, sig2_b_ref, w_ref, b_ref, o_ref,
                 *, hw, k, eps, affine, use_adjust):
    x = x_ref[...].astype(jnp.float32)            # (1, TC, HW)
    mu_b = mu_b_ref[...]                          # (1, TC, 1)
    sigma2_b = sig2_b_ref[...]                    # (1, TC, 1)

    if use_adjust:
        inv_hw = 1.0 / float(hw)
        # two-pass mean/var over the spatial (lane) axis — numerically safe
        mu = jnp.sum(x, axis=-1, keepdims=True) * inv_hw          # (1, TC, 1)
        diff = x - mu                                             # (1, TC, HW)
        sigma2 = jnp.sum(diff * diff, axis=-1, keepdims=True) * (1.0 / float(hw - 1))

        s_mu = jnp.sqrt((sigma2_b + eps) * inv_hw)
        s_sigma2 = (sigma2_b + eps) * math.sqrt(2.0 / (hw - 1))
        mu_adj = mu_b + _softshrink(mu - mu_b, k * s_mu)
        sigma2_adj = sigma2_b + _softshrink(sigma2 - sigma2_b, k * s_sigma2)
        sigma2_adj = jnp.maximum(sigma2_adj, 0.0)

        inv_std = jax.lax.rsqrt(sigma2_adj + eps)                 # EUP, per-channel only
        # x_n = (x - mu_adj) * inv_std = diff * inv_std + (mu - mu_adj) * inv_std
        if affine:
            scale = w_ref[...] * inv_std
            shift = (mu - mu_adj) * scale + b_ref[...]
        else:
            scale = inv_std
            shift = (mu - mu_adj) * inv_std
        o_ref[...] = (diff * scale + shift).astype(o_ref.dtype)
    else:
        # HW <= threshold: use running stats directly; no reduction over the tile.
        inv_std = jax.lax.rsqrt(sigma2_b + eps)
        if affine:
            scale = w_ref[...] * inv_std
            shift = b_ref[...] - mu_b * scale
        else:
            scale = inv_std
            shift = -mu_b * inv_std
        o_ref[...] = (x * scale + shift).astype(o_ref.dtype)


def _pick_channel_tile(C, HW, itemsize=4, target_bytes=2 * 1024 * 1024):
    """Channel-tile size: multiple of 8 (f32 sublane) targeting ~2 MB per buffer."""
    if C <= 8 or C * HW * itemsize <= target_bytes:
        return C                       # full channel extent already fits the budget
    max_tc = max(8, (target_bytes // (HW * itemsize)) // 8 * 8)
    tc = max(8, min((C // 8) * 8, max_tc))
    # prefer an exact divisor of C so there is no ragged (masked) channel edge
    for cand in range(tc, 7, -8):
        if C % cand == 0:
            return cand
    return tc


def instance_aware_batchnorm2d(x, running_mean, running_var, weight=None, bias=None,
                               *, k=3.0, eps=1e-5, threshold=1, affine=True):
    """x: (B, C, H, W) float32 (NCHW, like PyTorch). Returns (B, C, H, W)."""
    B, C, H, W = x.shape
    HW = H * W
    x_flat = x.reshape(B, C, HW)

    # per-channel params broadcast-ready: (1, C, 1)
    mu_b = running_mean.reshape(1, C, 1).astype(jnp.float32)
    sig2_b = running_var.reshape(1, C, 1).astype(jnp.float32)
    if weight is None:
        weight = jnp.ones((C,), jnp.float32)
    if bias is None:
        bias = jnp.zeros((C,), jnp.float32)
    w = weight.reshape(1, C, 1).astype(jnp.float32)
    b = bias.reshape(1, C, 1).astype(jnp.float32)

    use_adjust = HW > threshold  # static (shape-dependent) decision, as in PyTorch

    TC = _pick_channel_tile(C, HW)
    n_c = pl.cdiv(C, TC)

    kernel = lambda *refs: _iabn_kernel(*refs, hw=HW, k=k, eps=eps,
                                        affine=affine, use_adjust=use_adjust)

    data_spec = pl.BlockSpec((1, TC, HW), lambda bi, ci: (bi, ci, 0))
    param_spec = pl.BlockSpec((1, TC, 1), lambda bi, ci: (0, ci, 0))

    out = pl.pallas_call(
        kernel,
        out_shape=jax.ShapeDtypeStruct((B, C, HW), x.dtype),
        grid_spec=pltpu.PrefetchScalarGridSpec(
            num_scalar_prefetch=0,
            grid=(B, n_c),
            in_specs=[
                data_spec,
                param_spec, param_spec, param_spec, param_spec,
            ],
            out_specs=data_spec,
        ),
        compiler_params=pltpu.CompilerParams(
            dimension_semantics=("parallel", "parallel")),
    )(x_flat, mu_b, sig2_b, w, b)

    return out.reshape(B, C, H, W)


def _reference(x, running_mean, running_var, weight, bias,
               *, k=3.0, eps=1e-5, threshold=1, affine=True):
    """Pure-JAX reference matching the PyTorch eval forward."""
    B, C, H, W = x.shape
    HW = H * W
    mu = jnp.mean(x, axis=(2, 3), keepdims=True)
    sigma2 = jnp.sum((x - mu) ** 2, axis=(2, 3), keepdims=True) / (HW - 1)
    mu_b = running_mean.reshape(1, C, 1, 1)
    sigma2_b = running_var.reshape(1, C, 1, 1)
    if HW <= threshold:
        mu_adj, sigma2_adj = mu_b, sigma2_b
    else:
        s_mu = jnp.sqrt((sigma2_b + eps) / HW)
        s_sigma2 = (sigma2_b + eps) * math.sqrt(2.0 / (HW - 1))
        mu_adj = mu_b + _softshrink(mu - mu_b, k * s_mu)
        sigma2_adj = sigma2_b + _softshrink(sigma2 - sigma2_b, k * s_sigma2)
        sigma2_adj = jnp.maximum(sigma2_adj, 0.0)
    x_n = (x - mu_adj) * jax.lax.rsqrt(sigma2_adj + eps)
    if affine:
        x_n = x_n * weight.reshape(1, C, 1, 1) + bias.reshape(1, C, 1, 1)
    return x_n


if __name__ == "__main__":
    key = jax.random.PRNGKey(0)
    kx, km, kv, kw, kb = jax.random.split(key, 5)

    B, C, H, W = 2, 4, 16, 16
    x = jax.random.normal(kx, (B, C, H, W), dtype=jnp.float32)

    # Deterministic synthetic parameters (shapes from nn.BatchNorm2d(num_channels)).
    running_mean = 0.1 * jax.random.normal(km, (C,), dtype=jnp.float32)
    running_var = 1.0 + 0.1 * jax.random.uniform(kv, (C,), dtype=jnp.float32)
    weight = 1.0 + 0.05 * jax.random.normal(kw, (C,), dtype=jnp.float32)
    bias = 0.05 * jax.random.normal(kb, (C,), dtype=jnp.float32)

    out = instance_aware_batchnorm2d(x, running_mean, running_var, weight, bias,
                                     k=3.0, eps=1e-5, threshold=1, affine=True)
    out = jax.block_until_ready(out)

    ref = _reference(x, running_mean, running_var, weight, bias,
                     k=3.0, eps=1e-5, threshold=1, affine=True)

    assert out.shape == (B, C, H, W)
    assert jnp.allclose(out, ref, atol=1e-5, rtol=1e-5), "mismatch vs reference"
    print("KERNEL_OK")
</pallas_src>

<mosaic_0001>
module attributes {stable_mosaic.version = 11 : i64} {
  func.func @_lambda_(%arg0: i32, %arg1: i32, %arg2: memref<1x4x256xf32, #tpu.memory_space<vmem>>, %arg3: memref<1x4x1xf32, #tpu.memory_space<vmem>>, %arg4: memref<1x4x1xf32, #tpu.memory_space<vmem>>, %arg5: memref<1x4x1xf32, #tpu.memory_space<vmem>>, %arg6: memref<1x4x1xf32, #tpu.memory_space<vmem>>, %arg7: memref<1x4x256xf32, #tpu.memory_space<vmem>>) attributes {dimension_semantics = [#tpu.dimension_semantics<parallel>, #tpu.dimension_semantics<parallel>], iteration_bounds = array<i64: 2, 1>, scalar_prefetch = 0 : i64, scratch_operands = 0 : i64, tpu.core_type = #tpu.core_type<tc>, window_params = [{transform_indices = @transform_0, window_bounds = array<i64: 1, 4, 256>}, {transform_indices = @transform_1, window_bounds = array<i64: 1, 4, 1>}, {transform_indices = @transform_2, window_bounds = array<i64: 1, 4, 1>}, {transform_indices = @transform_3, window_bounds = array<i64: 1, 4, 1>}, {transform_indices = @transform_4, window_bounds = array<i64: 1, 4, 1>}, {transform_indices = @transform_5, window_bounds = array<i64: 1, 4, 256>}]} {
    %c0 = arith.constant 0 : index
    %c0_0 = arith.constant 0 : index
    %c0_1 = arith.constant 0 : index
    %0 = vector.load %arg2[%c0, %c0_0, %c0_1] : memref<1x4x256xf32, #tpu.memory_space<vmem>>, vector<1x4x256xf32>
    %c0_2 = arith.constant 0 : index
    %c0_3 = arith.constant 0 : index
    %c0_4 = arith.constant 0 : index
    %1 = vector.load %arg3[%c0_2, %c0_3, %c0_4] : memref<1x4x1xf32, #tpu.memory_space<vmem>>, vector<1x4x1xf32>
    %c0_5 = arith.constant 0 : index
    %c0_6 = arith.constant 0 : index
    %c0_7 = arith.constant 0 : index
    %2 = vector.load %arg4[%c0_5, %c0_6, %c0_7] : memref<1x4x1xf32, #tpu.memory_space<vmem>>, vector<1x4x1xf32>
    %cst = arith.constant dense<0.000000e+00> : vector<1x4xf32>
    %3 = vector.multi_reduction <add>, %0, %cst [2] : vector<1x4x256xf32> to vector<1x4xf32>
    %4 = vector.shape_cast %3 : vector<1x4xf32> to vector<1x4x1xf32>
    %cst_8 = arith.constant 3.906250e-03 : f32
    %5 = vector.broadcast %cst_8 : f32 to vector<1x4x1xf32>
    %6 = arith.mulf %4, %5 : vector<1x4x1xf32>
    %7 = vector.broadcast %6 : vector<1x4x1xf32> to vector<1x4x256xf32>
    %8 = arith.subf %0, %7 : vector<1x4x256xf32>
    %9 = arith.mulf %8, %8 : vector<1x4x256xf32>
    %cst_9 = arith.constant dense<0.000000e+00> : vector<1x4xf32>
    %10 = vector.multi_reduction <add>, %9, %cst_9 [2] : vector<1x4x256xf32> to vector<1x4xf32>
    %11 = vector.shape_cast %10 : vector<1x4xf32> to vector<1x4x1xf32>
    %cst_10 = arith.constant 0.00392156886 : f32
    %12 = vector.broadcast %cst_10 : f32 to vector<1x4x1xf32>
    %13 = arith.mulf %11, %12 : vector<1x4x1xf32>
    %cst_11 = arith.constant 9.99999974E-6 : f32
    %14 = vector.broadcast %cst_11 : f32 to vector<1x4x1xf32>
    %15 = arith.addf %2, %14 : vector<1x4x1xf32>
    %cst_12 = arith.constant 3.906250e-03 : f32
    %16 = vector.broadcast %cst_12 : f32 to vector<1x4x1xf32>
    %17 = arith.mulf %15, %16 : vector<1x4x1xf32>
    %18 = math.sqrt %17 : vector<1x4x1xf32>
    %cst_13 = arith.constant 9.99999974E-6 : f32
    %19 = vector.broadcast %cst_13 : f32 to vector<1x4x1xf32>
    %20 = arith.addf %2, %19 : vector<1x4x1xf32>
    %cst_14 = arith.constant 0.0885614902 : f32
    %21 = vector.broadcast %cst_14 : f32 to vector<1x4x1xf32>
    %22 = arith.mulf %20, %21 : vector<1x4x1xf32>
    %23 = arith.subf %6, %1 : vector<1x4x1xf32>
    %cst_15 = arith.constant 3.000000e+00 : f32
    %24 = vector.broadcast %cst_15 : f32 to vector<1x4x1xf32>
    %25 = arith.mulf %24, %18 : vector<1x4x1xf32>
    %26 = arith.subf %23, %25 : vector<1x4x1xf32>
    %cst_16 = arith.constant 0.000000e+00 : f32
    %27 = vector.broadcast %cst_16 : f32 to vector<1x4x1xf32>
    %28 = arith.maximumf %26, %27 : vector<1x4x1xf32>
    %29 = arith.addf %23, %25 : vector<1x4x1xf32>
    %cst_17 = arith.constant 0.000000e+00 : f32
    %30 = vector.broadcast %cst_17 : f32 to vector<1x4x1xf32>
    %31 = arith.subf %30, %29 : vector<1x4x1xf32>
    %cst_18 = arith.constant 0.000000e+00 : f32
    %32 = vector.broadcast %cst_18 : f32 to vector<1x4x1xf32>
    %33 = arith.maximumf %31, %32 : vector<1x4x1xf32>
    %34 = arith.subf %28, %33 : vector<1x4x1xf32>
    %35 = arith.addf %1, %34 : vector<1x4x1xf32>
    %36 = arith.subf %13, %2 : vector<1x4x1xf32>
    %cst_19 = arith.constant 3.000000e+00 : f32
    %37 = vector.broadcast %cst_19 : f32 to vector<1x4x1xf32>
    %38 = arith.mulf %37, %22 : vector<1x4x1xf32>
    %39 = arith.subf %36, %38 : vector<1x4x1xf32>
    %cst_20 = arith.constant 0.000000e+00 : f32
    %40 = vector.broadcast %cst_20 : f32 to vector<1x4x1xf32>
    %41 = arith.maximumf %39, %40 : vector<1x4x1xf32>
    %42 = arith.addf %36, %38 : vector<1x4x1xf32>
    %cst_21 = arith.constant 0.000000e+00 : f32
    %43 = vector.broadcast %cst_21 : f32 to vector<1x4x1xf32>
    %44 = arith.subf %43, %42 : vector<1x4x1xf32>
    %cst_22 = arith.constant 0.000000e+00 : f32
    %45 = vector.broadcast %cst_22 : f32 to vector<1x4x1xf32>
    %46 = arith.maximumf %44, %45 : vector<1x4x1xf32>
    %47 = arith.subf %41, %46 : vector<1x4x1xf32>
    %48 = arith.addf %2, %47 : vector<1x4x1xf32>
    %cst_23 = arith.constant 0.000000e+00 : f32
    %49 = vector.broadcast %cst_23 : f32 to vector<1x4x1xf32>
    %50 = arith.maximumf %48, %49 : vector<1x4x1xf32>
    %cst_24 = arith.constant 9.99999974E-6 : f32
    %51 = vector.broadcast %cst_24 : f32 to vector<1x4x1xf32>
    %52 = arith.addf %50, %51 : vector<1x4x1xf32>
    %53 = math.rsqrt %52 : vector<1x4x1xf32>
    %c0_25 = arith.constant 0 : index
    %c0_26 = arith.constant 0 : index
    %c0_27 = arith.constant 0 : index
    %54 = vector.load %arg5[%c0_25, %c0_26, %c0_27] : memref<1x4x1xf32, #tpu.memory_space<vmem>>, vector<1x4x1xf32>
    %55 = arith.mulf %54, %53 : vector<1x4x1xf32>
    %56 = arith.subf %6, %35 : vector<1x4x1xf32>
    %57 = arith.mulf %56, %55 : vector<1x4x1xf32>
    %c0_28 = arith.constant 0 : index
    %c0_29 = arith.constant 0 : index
    %c0_30 = arith.constant 0 : index
    %58 = vector.load %arg6[%c0_28, %c0_29, %c0_30] : memref<1x4x1xf32, #tpu.memory_space<vmem>>, vector<1x4x1xf32>
    %59 = arith.addf %57, %58 : vector<1x4x1xf32>
    %60 = vector.broadcast %55 : vector<1x4x1xf32> to vector<1x4x256xf32>
    %61 = arith.mulf %8, %60 : vector<1x4x256xf32>
    %62 = vector.broadcast %59 : vector<1x4x1xf32> to vector<1x4x256xf32>
    %63 = arith.addf %61, %62 : vector<1x4x256xf32>
    %c0_31 = arith.constant 0 : index
    %c0_32 = arith.constant 0 : index
    %c0_33 = arith.constant 0 : index
    %64 = vector.load %arg7[%c0_31, %c0_32, %c0_33] : memref<1x4x256xf32, #tpu.memory_space<vmem>>, vector<1x4x256xf32>
    tpu.vector_store %arg7[%c0_31, %c0_32, %c0_33], %63 {strides = array<i32>} : memref<1x4x256xf32, #tpu.memory_space<vmem>>, vector<1x4x256xf32>,
    return
  }
  func.func @transform_0(%arg0: i32, %arg1: i32) -> (i32, i32, i32) {
    %c0_i32 = arith.constant 0 : i32
    %c0_i32_0 = arith.constant 0 : i32
    return %arg0, %arg1, %c0_i32 : i32, i32, i32
  }
  func.func @transform_1(%arg0: i32, %arg1: i32) -> (i32, i32, i32) {
    %c0_i32 = arith.constant 0 : i32
    %c0_i32_0 = arith.constant 0 : i32
    %c0_i32_1 = arith.constant 0 : i32
    return %c0_i32, %arg1, %c0_i32_0 : i32, i32, i32
  }
  func.func @transform_2(%arg0: i32, %arg1: i32) -> (i32, i32, i32) {
    %c0_i32 = arith.constant 0 : i32
    %c0_i32_0 = arith.constant 0 : i32
    %c0_i32_1 = arith.constant 0 : i32
    return %c0_i32, %arg1, %c0_i32_0 : i32, i32, i32
  }
  func.func @transform_3(%arg0: i32, %arg1: i32) -> (i32, i32, i32) {
    %c0_i32 = arith.constant 0 : i32
    %c0_i32_0 = arith.constant 0 : i32
    %c0_i32_1 = arith.constant 0 : i32
    return %c0_i32, %arg1, %c0_i32_0 : i32, i32, i32
  }
  func.func @transform_4(%arg0: i32, %arg1: i32) -> (i32, i32, i32) {
    %c0_i32 = arith.constant 0 : i32
    %c0_i32_0 = arith.constant 0 : i32
    %c0_i32_1 = arith.constant 0 : i32
    return %c0_i32, %arg1, %c0_i32_0 : i32, i32, i32
  }
  func.func @transform_5(%arg0: i32, %arg1: i32) -> (i32, i32, i32) {
    %c0_i32 = arith.constant 0 : i32
    %c0_i32_0 = arith.constant 0 : i32
    return %arg0, %arg1, %c0_i32 : i32, i32, i32
  }
}

</mosaic_0001>

<llo_original>
// kernel: tpu_custom_call.1
$region0: #{tpu_custom_call.1}
  #allocation0 [shape = 'u32[]', space=smem, size = 0x4, offset = 0x4, fixed_abs, tag = 'smem constant byte address 0x4 - core index']
  #allocation1 [shape = 'u32[144,128]{1,0:T(1,128)}', space=vmem, size = 0x12000, scoped, tag = 'internal scratch']
  %s0 = inlined_call_operand.vmem [shape: f32[2,4,256], index: 0, kind: input, shape index: {}]
  %s1 = inlined_call_operand.vmem [shape: f32[1,4,1], index: 1, kind: input, shape index: {}]
  %s2 = inlined_call_operand.vmem [shape: f32[1,4,1], index: 2, kind: input, shape index: {}]
  %s3 = inlined_call_operand.vmem [shape: f32[1,4,1], index: 3, kind: input, shape index: {}]
  %s4 = inlined_call_operand.vmem [shape: f32[1,4,1], index: 4, kind: input, shape index: {}]
  %s5 = inlined_call_operand.hbm [shape: f32[2,4,256], index: 5, kind: output, shape index: {}]
  %s6 = sld [smem:[#allocation0]]
  $region53: #{tpu_custom_call.1} parent=0
    _
  %s8 = ssub.s32 1, %s6
  %s9 = scalar_select 0, %s8, %s6
  $region1: #{tpu_custom_call.1} parent=0
    #allocation2 [shape = 'u8[8192]{0}', space=vmem, size = 0x2000, scoped, tag = 'output window, operand 0']
    #allocation3 [shape = 's32[2]{0}', space=sflag, size = 0x8, scoped, tag = 'scoped memory for tpu_custom_call.1']
    %10 = vsyncpa [#allocation3], 0
    %s11 = scalar_lea.sflag [#allocation3], 1
    %12 = vsyncpa %s11, 0
    loop: start=0, step=1, limit=4
    $region2: #{tpu_custom_call.1} parent=1 // loop_pre_header
      _
    $region3: #{tpu_custom_call.1} parent=1 // loop_header
      %s14 = sphi 0, %s18
      %p15 = scmp.ge.s32.totalorder %s14, 4
      %s21 = sphi 0, %s33
      %s22 = sphi 0, %s29
      %s23 = sphi 0, %s21
      %s24 = sphi 0, %s22
      %s25 = sphi 0, %s23
      %s26 = sphi 0, %s24
      %s38 = sphi 0, %s40
      %s41 = sphi 0, %s38
      %s42 = sphi 0, %s41
      %s58 = sphi 0, %s42
      %s64 = sphi 0, %s66
      %s67 = sphi 0, %s64
      %s68 = sphi 0, %s67
      %s84 = sphi 0, %s68
      %s90 = sphi 0, %s92
      %s93 = sphi 0, %s90
      %s94 = sphi 0, %s93
      %s110 = sphi 0, %s94
      %s116 = sphi 0, %s118
      %s119 = sphi 0, %s116
      %s120 = sphi 0, %s119
      %s136 = sphi 0, %s120
      %s142 = sphi 0, %s144
      %s145 = sphi 0, %s142
      %s146 = sphi 0, %s145
      %s162 = sphi 0, %s146
      %s170 = sphi 0, %s172
      %s173 = sphi 0, %s170
      %s174 = sphi 0, %s173
      %s190 = sphi 0, %s174
    $region4: #{tpu_custom_call.1} parent=1 // loop_header_branch
      %17 = sbr.rel (%p15) target = $region8
    $region5: #{tpu_custom_call.1} parent=1 // loop_body
      %s19 = ssub.s32 %s14, 1
      %s20 = ssub.s32 %s14, 2
      %s27 = sadd.s32 1, %s22
      %p28 = scmp.ge.s32.totalorder %s27, 1
      %s29 = scalar_select %p28, 0, %s27
      %s30 = sadd.s32 1, %s21
      %s31 = scalar_select %p28, %s30, %s21
      %p32 = scmp.ge.s32.totalorder %s31, 2
      %s33 = scalar_select %p32, 0, %s31
      %s34 = ssub.s32 %s21, %s33
      %s35 = ssub.s32 %s22, %s29
      %s36 = sor.u32 %s34, %s35
      %p37 = scmp.eq.s32.totalorder %s36, 0
      %s39 = sadd.s32 %s38, 1
      %s40 = scalar_select %p37, %s38, %s39
      %p43 = pneg %p37
      %p44 = scmp.eq.s32.totalorder %s14, 1
      %p45 = por %p43, %p44
      %p46 = scmp.ne.s32.totalorder %s38, %s41
      %p47 = scmp.eq.s32.totalorder %s14, 0
      %p48 = por %p46, %p47
      %p49 = scmp.ne.s32.totalorder %s38, %s41
      %p50 = scmp.eq.s32.totalorder %s19, 1
      %p51 = por %p49, %p50
      %p52 = scmp.ne.s32.totalorder %s41, %s42
      %p53 = scmp.eq.s32.totalorder %s19, 0
      %p54 = por %p52, %p53
      %p55 = scmp.ne.s32.totalorder %s41, %s42
      %p56 = scmp.eq.s32.totalorder %s20, 1
      %p57 = por %p55, %p56
      %p59 = scmp.ne.s32.totalorder %s42, %s58
      %p60 = scmp.eq.s32.totalorder %s20, 0
      %p61 = por %p59, %p60
      %s62 = ssub.s32 %s22, %s29
      %p63 = scmp.eq.s32.totalorder %s62, 0
      %s65 = sadd.s32 %s64, 1
      %s66 = scalar_select %p63, %s64, %s65
      %p69 = pneg %p63
      %p70 = scmp.eq.s32.totalorder %s14, 1
      %p71 = por %p69, %p70
      %p72 = scmp.ne.s32.totalorder %s64, %s67
      %p73 = scmp.eq.s32.totalorder %s14, 0
      %p74 = por %p72, %p73
      %p75 = scmp.ne.s32.totalorder %s64, %s67
      %p76 = scmp.eq.s32.totalorder %s19, 1
      %p77 = por %p75, %p76
      %p78 = scmp.ne.s32.totalorder %s67, %s68
      %p79 = scmp.eq.s32.totalorder %s19, 0
      %p80 = por %p78, %p79
      %p81 = scmp.ne.s32.totalorder %s67, %s68
      %p82 = scmp.eq.s32.totalorder %s20, 1
      %p83 = por %p81, %p82
      %p85 = scmp.ne.s32.totalorder %s68, %s84
      %p86 = scmp.eq.s32.totalorder %s20, 0
      %p87 = por %p85, %p86
      %s88 = ssub.s32 %s22, %s29
      %p89 = scmp.eq.s32.totalorder %s88, 0
      %s91 = sadd.s32 %s90, 1
      %s92 = scalar_select %p89, %s90, %s91
      %p95 = pneg %p89
      %p96 = scmp.eq.s32.totalorder %s14, 1
      %p97 = por %p95, %p96
      %p98 = scmp.ne.s32.totalorder %s90, %s93
      %p99 = scmp.eq.s32.totalorder %s14, 0
      %p100 = por %p98, %p99
      %p101 = scmp.ne.s32.totalorder %s90, %s93
      %p102 = scmp.eq.s32.totalorder %s19, 1
      %p103 = por %p101, %p102
      %p104 = scmp.ne.s32.totalorder %s93, %s94
      %p105 = scmp.eq.s32.totalorder %s19, 0
      %p106 = por %p104, %p105
      %p107 = scmp.ne.s32.totalorder %s93, %s94
      %p108 = scmp.eq.s32.totalorder %s20, 1
      %p109 = por %p107, %p108
      %p111 = scmp.ne.s32.totalorder %s94, %s110
      %p112 = scmp.eq.s32.totalorder %s20, 0
      %p113 = por %p111, %p112
      %s114 = ssub.s32 %s22, %s29
      %p115 = scmp.eq.s32.totalorder %s114, 0
      %s117 = sadd.s32 %s116, 1
      %s118 = scalar_select %p115, %s116, %s117
      %p121 = pneg %p115
      %p122 = scmp.eq.s32.totalorder %s14, 1
      %p123 = por %p121, %p122
      %p124 = scmp.ne.s32.totalorder %s116, %s119
      %p125 = scmp.eq.s32.totalorder %s14, 0
      %p126 = por %p124, %p125
      %p127 = scmp.ne.s32.totalorder %s116, %s119
      %p128 = scmp.eq.s32.totalorder %s19, 1
      %p129 = por %p127, %p128
      %p130 = scmp.ne.s32.totalorder %s119, %s120
      %p131 = scmp.eq.s32.totalorder %s19, 0
      %p132 = por %p130, %p131
      %p133 = scmp.ne.s32.totalorder %s119, %s120
      %p134 = scmp.eq.s32.totalorder %s20, 1
      %p135 = por %p133, %p134
      %p137 = scmp.ne.s32.totalorder %s120, %s136
      %p138 = scmp.eq.s32.totalorder %s20, 0
      %p139 = por %p137, %p138
      %s140 = ssub.s32 %s22, %s29
      %p141 = scmp.eq.s32.totalorder %s140, 0
      %s143 = sadd.s32 %s142, 1
      %s144 = scalar_select %p141, %s142, %s143
      %p147 = pneg %p141
      %p148 = scmp.eq.s32.totalorder %s14, 1
      %p149 = por %p147, %p148
      %p150 = scmp.ne.s32.totalorder %s142, %s145
      %p151 = scmp.eq.s32.totalorder %s14, 0
      %p152 = por %p150, %p151
      %p153 = scmp.ne.s32.totalorder %s142, %s145
      %p154 = scmp.eq.s32.totalorder %s19, 1
      %p155 = por %p153, %p154
      %p156 = scmp.ne.s32.totalorder %s145, %s146
      %p157 = scmp.eq.s32.totalorder %s19, 0
      %p158 = por %p156, %p157
      %p159 = scmp.ne.s32.totalorder %s145, %s146
      %p160 = scmp.eq.s32.totalorder %s20, 1
      %p161 = por %p159, %p160
      %p163 = scmp.ne.s32.totalorder %s146, %s162
      %p164 = scmp.eq.s32.totalorder %s20, 0
      %p165 = por %p163, %p164
      %s166 = ssub.s32 %s21, %s33
      %s167 = ssub.s32 %s22, %s29
      %s168 = sor.u32 %s166, %s167
      %p169 = scmp.eq.s32.totalorder %s168, 0
      %s171 = sadd.s32 %s170, 1
      %s172 = scalar_select %p169, %s170, %s171
      %p175 = pneg %p169
      %p176 = scmp.eq.s32.totalorder %s14, 1
      %p177 = por %p175, %p176
      %p178 = scmp.ne.s32.totalorder %s170, %s173
      %p179 = scmp.eq.s32.totalorder %s14, 0
      %p180 = por %p178, %p179
      %p181 = scmp.ne.s32.totalorder %s170, %s173
      %p182 = scmp.eq.s32.totalorder %s19, 1
      %p183 = por %p181, %p182
      %p184 = scmp.ne.s32.totalorder %s173, %s174
      %p185 = scmp.eq.s32.totalorder %s19, 0
      %p186 = por %p184, %p185
      %p187 = scmp.ne.s32.totalorder %s173, %s174
      %p188 = scmp.eq.s32.totalorder %s20, 1
      %p189 = por %p187, %p188
      %p191 = scmp.ne.s32.totalorder %s174, %s190
      %p192 = scmp.eq.s32.totalorder %s20, 0
      %p193 = por %p191, %p192
      %p194 = scmp.le.s32.totalorder 1, %s14
      %p195 = scmp.lt.s32.totalorder %s14, 3
      %p196 = pnand %p194, %p195
      %p197 = pneg %p196
      // Predicated region
      $region9: #{tpu_custom_call.1} parent=5 // pred_check
        _
      $region10: #{tpu_custom_call.1} parent=5 // pred_check_branch
        %199 = sbr.rel (%p196) target = $region12
      $region11: #{tpu_custom_call.1} parent=5 // pred_region
        %s200 = ssub.s32 %s14, 1
        // Predicated region
        $region13: #{tpu_custom_call.1} parent=11 // pred_check
          %p201 = pneg %p80
        $region14: #{tpu_custom_call.1} parent=11 // pred_check_branch
          %203 = sbr.rel (%p201) target = $region16
        $region15: #{tpu_custom_call.1} parent=11 // pred_region
          %p204 = scmp.lt.s32.totalorder %s24, 0
          %s205 = scalar_select %p204, %s24, 0
          %s206 = smul.addr %s205, 4
          %s207 = scalar_lea.vmem %s1, %s206
        $region16: #{tpu_custom_call.1} parent=11 // pred_fallthru
          _
        // Predicated region
        $region17: #{tpu_custom_call.1} parent=11 // pred_check
          %p208 = pneg %p106
        $region18: #{tpu_custom_call.1} parent=11 // pred_check_branch
          %210 = sbr.rel (%p208) target = $region20
        $region19: #{tpu_custom_call.1} parent=11 // pred_region
          %p211 = scmp.lt.s32.totalorder %s24, 0
          %s212 = scalar_select %p211, %s24, 0
          %s213 = smul.addr %s212, 4
          %s214 = scalar_lea.vmem %s2, %s213
        $region20: #{tpu_custom_call.1} parent=11 // pred_fallthru
          _
        // Predicated region
        $region21: #{tpu_custom_call.1} parent=11 // pred_check
          %p215 = pneg %p132
        $region22: #{tpu_custom_call.1} parent=11 // pred_check_branch
          %217 = sbr.rel (%p215) target = $region24
        $region23: #{tpu_custom_call.1} parent=11 // pred_region
          %p218 = scmp.lt.s32.totalorder %s24, 0
          %s219 = scalar_select %p218, %s24, 0
          %s220 = smul.addr %s219, 4
          %s221 = scalar_lea.vmem %s3, %s220
        $region24: #{tpu_custom_call.1} parent=11 // pred_fallthru
          _
        // Predicated region
        $region25: #{tpu_custom_call.1} parent=11 // pred_check
          %p222 = pneg %p158
        $region26: #{tpu_custom_call.1} parent=11 // pred_check_branch
          %224 = sbr.rel (%p222) target = $region28
        $region27: #{tpu_custom_call.1} parent=11 // pred_region
          %p225 = scmp.lt.s32.totalorder %s24, 0
          %s226 = scalar_select %p225, %s24, 0
          %s227 = smul.addr %s226, 4
          %s228 = scalar_lea.vmem %s4, %s227
        $region28: #{tpu_custom_call.1} parent=11 // pred_fallthru
          _
      $region12: #{tpu_custom_call.1} parent=5 // pred_fallthru
        _
      %p229 = scmp.lt.s32.totalorder %s14, 2
      // Predicated region
      $region29: #{tpu_custom_call.1} parent=5 // pred_check
        %p230 = pneg %p229
      $region30: #{tpu_custom_call.1} parent=5 // pred_check_branch
        %232 = sbr.rel (%p230) target = $region32
      $region31: #{tpu_custom_call.1} parent=5 // pred_region
        // Predicated region
        $region33: #{tpu_custom_call.1} parent=31 // pred_check
          %p233 = pneg %p48
        $region34: #{tpu_custom_call.1} parent=31 // pred_check_branch
          %235 = sbr.rel (%p233) target = $region36
        $region35: #{tpu_custom_call.1} parent=31 // pred_region
          %p236 = scmp.lt.s32.totalorder %s21, 1
          %s237 = scalar_select %p236, %s21, 1
          %p238 = scmp.lt.s32.totalorder %s22, 0
          %s239 = scalar_select %p238, %s22, 0
          %s240 = smul.addr %s239, 2
          %s241 = smul.addr %s237, 2
          %s242 = sadd.s32 %s240, %s241
          %s243 = smul.addr %s242, 4
          %s244 = scalar_lea.vmem %s0, %s243
        $region36: #{tpu_custom_call.1} parent=31 // pred_fallthru
          _
      $region32: #{tpu_custom_call.1} parent=5 // pred_fallthru
        _
      %p245 = scmp.le.s32.totalorder 1, %s14
      %p246 = scmp.lt.s32.totalorder %s14, 3
      %p247 = pnand %p245, %p246
      %p248 = pneg %p247
      // Predicated region
      $region37: #{tpu_custom_call.1} parent=5 // pred_check
        _
      $region38: #{tpu_custom_call.1} parent=5 // pred_check_branch
        %250 = sbr.rel (%p247) target = $region40
      $region39: #{tpu_custom_call.1} parent=5 // pred_region
        %s251 = ssub.s32 %s14, 1
        %p252 = scmp.lt.s32.totalorder %s23, 1
        %s253 = scalar_select %p252, %s23, 1
        %p254 = scmp.lt.s32.totalorder %s24, 0
        %s255 = scalar_select %p254, %s24, 0
        %s256 = smul.addr %s255, 2
        %s257 = smul.addr %s253, 2
        %s258 = sadd.s32 %s256, %s257
        %s259 = smul.addr %s258, 4
        %s260 = scalar_lea.vmem %s0, %s259
        %p261 = pneg %p54
        %p262 = pneg %p51
        %p263 = scmp.lt.s32.totalorder %s24, 0
        %s264 = scalar_select %p263, %s24, 0
        %s265 = smul.addr %s264, 4
        %s266 = scalar_lea.vmem %s1, %s265
        %p267 = pneg %p80
        %p268 = pneg %p77
        %p269 = scmp.lt.s32.totalorder %s24, 0
        %s270 = scalar_select %p269, %s24, 0
        %s271 = smul.addr %s270, 4
        %s272 = scalar_lea.vmem %s2, %s271
        %p273 = pneg %p106
        %p274 = pneg %p103
        %p275 = scmp.lt.s32.totalorder %s24, 0
        %s276 = scalar_select %p275, %s24, 0
        %s277 = smul.addr %s276, 4
        %s278 = scalar_lea.vmem %s3, %s277
        %p279 = pneg %p132
        %p280 = pneg %p129
        %p281 = scmp.lt.s32.totalorder %s24, 0
        %s282 = scalar_select %p281, %s24, 0
        %s283 = smul.addr %s282, 4
        %s284 = scalar_lea.vmem %s4, %s283
        %p285 = pneg %p158
        %p286 = pneg %p155
        %p287 = pneg %p186
        %p288 = pneg %p183
        %s289 = sand.u32 %s173, 1
        %s290 = scalar_lea.sflag [#allocation3], %s289
        %s291 = sand.u32 %s173, 1
        %s292 = smul.addr %s291, 8
        %s293 = scalar_lea.vmem [#allocation2], %s292
        %p294 = scmp.lt.s32.totalorder %s23, 1
        %s295 = scalar_select %p294, %s23, 1
        %p296 = scmp.lt.s32.totalorder %s24, 0
        %s297 = scalar_select %p296, %s24, 0
        %s298 = smul.addr %s297, 2
        %s299 = smul.addr %s295, 2
        %s300 = sadd.s32 %s298, %s299
        %s301 = smul.addr %s300, 4
        %s302 = scalar_lea.vmem %s0, %s301
        %p303 = scmp.lt.s32.totalorder %s24, 0
        %s304 = scalar_select %p303, %s24, 0
        %s305 = smul.addr %s304, 4
        %s306 = scalar_lea.vmem %s1, %s305
        %p307 = scmp.lt.s32.totalorder %s24, 0
        %s308 = scalar_select %p307, %s24, 0
        %s309 = smul.addr %s308, 4
        %s310 = scalar_lea.vmem %s2, %s309
        %p311 = scmp.lt.s32.totalorder %s24, 0
        %s312 = scalar_select %p311, %s24, 0
        %s313 = smul.addr %s312, 4
        %s314 = scalar_lea.vmem %s3, %s313
        %p315 = scmp.lt.s32.totalorder %s24, 0
        %s316 = scalar_select %p315, %s24, 0
        %s317 = smul.addr %s316, 4
        %s318 = scalar_lea.vmem %s4, %s317
        %v319 = vld [vmem:[%s302] sm:$0xff]
        %v320 = vld [vmem:[%s306] sm:$0xf]
        %v321 = vld [vmem:[%s310] sm:$0xf]
        %v323 = vcombine.high %v319, %v319
        %vm325 = vcmask 1043456
        %v326 = vsel %vm325, %v319, 0.0
        %v327 = vsel %vm325, %v323, 0.0
        %v328 = vadd.f32 %v326, %v327
        %329 = vadd.xlane.f32.xlu0 %v328
        %v330 = vpop.xlane.xlu0 %329
        %v331 = vmul.f32 %v330, 0.00390625
        %v334 = vunpack.c.l.s4 839922192
        %v335 = vunpack.c.0.s8 %v334
        %v336 = vlaneseq
        %v337 = vshrl.u32 %v336, 7
        %v338 = vsub.s32 %v335, %v337
        %v339 = vrot.slane %v331, %v338
        %v341 = vsub.f32 %v319, %v339
        %v342 = vmul.f32 %v341, %v341
        %v344 = vcombine.high %v342, %v342
        %v346 = vsel %vm325, %v342, 0.0
        %v347 = vsel %vm325, %v344, 0.0
        %v348 = vadd.f32 %v346, %v347
        %349 = vadd.xlane.f32.xlu0 %v348
        %v350 = vpop.xlane.xlu0 %349
        %v351 = vmul.f32 %v350, 0.003921569
        %v352 = vadd.f32 %v321, 1e-05
        %v353 = vmul.f32 %v352, 0.00390625
        %v354 = vrsqrt.pop %v353
        %v355 = vmul.f32 %v353, %v354
        %vm356 = vcmp.eq.f32.partialorder %v353, inf
        %v357 = vsel %vm356, %v353, %v355
        %vm358 = vcmp.eq.f32.partialorder %v353, 0.0
        %v359 = vand.u32 %v353, 2147483648
        %v360 = vsel %vm358, %v359, %v357
        %v361 = vmul.f32 %v352, 0.08856149
        %v362 = vsub.f32 %v331, %v320
        %v363 = vmul.f32 %v360, 3.0
        %v364 = vsub.f32 %v362, %v363
        %v365 = vmax.f32 %v364, 0.0
        %v366 = vadd.f32 %v362, %v363
        %v367 = vsub.f32 0.0, %v366
        %v368 = vmax.f32 %v367, 0.0
        %v369 = vsub.f32 %v365, %v368
        %v370 = vadd.f32 %v320, %v369
        %v371 = vsub.f32 %v351, %v321
        %v372 = vmul.f32 %v361, 3.0
        %v373 = vsub.f32 %v371, %v372
        %v374 = vmax.f32 %v373, 0.0
        %v375 = vadd.f32 %v371, %v372
        %v376 = vsub.f32 0.0, %v375
        %v377 = vmax.f32 %v376, 0.0
        %v378 = vsub.f32 %v374, %v377
        %v379 = vadd.f32 %v321, %v378
        %v380 = vmax.f32 %v379, 0.0
        %v381 = vadd.f32 %v380, 1e-05
        %v382 = vrsqrt.pop %v381
        %v383 = vld [vmem:[%s314] sm:$0xf]
        %v384 = vmul.f32 %v383, %v382
        %v385 = vsub.f32 %v331, %v370
        %v386 = vmul.f32 %v385, %v384
        %v387 = vld [vmem:[%s318] sm:$0xf]
        %v388 = vadd.f32 %v386, %v387
        %390 = vset.pattern.permute.xlu0 0
        %391 = vperm.xlu0 %390, %v384
        %v392 = vpop.permute.xlu0 %391
        %v394 = vunpack.c.l.s4 839922192
        %v395 = vunpack.c.0.s8 %v394
        %v396 = vlaneseq
        %v397 = vshrl.u32 %v396, 7
        %v398 = vsub.s32 %v395, %v397
        %v399 = vrot.slane %v392, %v398
        %v401 = vmul.f32 %v341, %v399
        %403 = vset.pattern.permute.xlu0 0
        %404 = vperm.xlu0 %403, %v388
        %v405 = vpop.permute.xlu0 %404
        %v407 = vunpack.c.l.s4 839922192
        %v408 = vunpack.c.0.s8 %v407
        %v409 = vlaneseq
        %v410 = vshrl.u32 %v409, 7
        %v411 = vsub.s32 %v408, %v410
        %v412 = vrot.slane %v405, %v411
        %v414 = vadd.f32 %v401, %v412
        %415 = vst [vmem:[%s293] sm:$0xff] %v414
        %s416 = sand.u32 %s173, 1
        %s417 = scalar_lea.sflag [#allocation3], %s416
        %s418 = sand.u32 %s173, 1
        %s419 = smul.addr %s418, 8
        %s420 = scalar_lea.vmem [#allocation2], %s419
        // Predicated region
        $region41: #{tpu_custom_call.1} parent=39 // pred_check
          %p421 = pneg %p183
        $region42: #{tpu_custom_call.1} parent=39 // pred_check_branch
          %423 = sbr.rel (%p421) target = $region44
        $region43: #{tpu_custom_call.1} parent=39 // pred_region
          %s425 = ssub.s32 128, 128
          %426 = vsyncadd %s417, %s425
          %s427 = smul.addr %s24, 2
          %s428 = smul.addr %s23, 2
          %s429 = sadd.s32 %s427, %s428
          %s430 = smul.addr %s429, 64
          %s431 = scalar_lea.hbm %s5, %s430
          %s433 = sshll.u32 %s420, 4
          %s434 = int_to_ptr.vmem [resolvable:$true] %s433
          %436 = dma.vmem_to_hbm [thread:$0]  %s434, 128, %s431, %s417
        $region44: #{tpu_custom_call.1} parent=39 // pred_fallthru
          _
      $region40: #{tpu_custom_call.1} parent=5 // pred_fallthru
        _
      %p437 = scmp.le.s32.totalorder 2, %s14
      // Predicated region
      $region45: #{tpu_custom_call.1} parent=5 // pred_check
        %p438 = pneg %p437
      $region46: #{tpu_custom_call.1} parent=5 // pred_check_branch
        %440 = sbr.rel (%p438) target = $region48
      $region47: #{tpu_custom_call.1} parent=5 // pred_region
        %s441 = ssub.s32 %s14, 2
        // Predicated region
        $region49: #{tpu_custom_call.1} parent=47 // pred_check
          %p442 = pneg %p189
        $region50: #{tpu_custom_call.1} parent=47 // pred_check_branch
          %444 = sbr.rel (%p442) target = $region52
        $region51: #{tpu_custom_call.1} parent=47 // pred_region
          %s445 = sand.u32 %s174, 1
          %s446 = scalar_lea.sflag [#allocation3], %s445
          %s447 = sand.u32 %s174, 1
          %s448 = smul.addr %s447, 8
          %s449 = scalar_lea.vmem [#allocation2], %s448
          %450 = dma.done %s446, 128
        $region52: #{tpu_custom_call.1} parent=47 // pred_fallthru
          _
      $region48: #{tpu_custom_call.1} parent=5 // pred_fallthru
        _
    $region6: #{tpu_custom_call.1} parent=1 // loop_footer
      %s18 = sadd.s32 1, %s14
    $region7: #{tpu_custom_call.1} parent=1 // loop_footer_branch
      %13 = sbr.rel target = $region3
    $region8: #{tpu_custom_call.1} parent=1 // loop_exit
      _
    %451 = vsyncpa [#allocation3], 1
    %s452 = scalar_lea.sflag [#allocation3], 1
    %453 = vsyncpa %s452, 1

</llo_original>
